<compile_context>
chip_gen: v7x
topology: tpu7x:2x2x1
jax: 0.10.0
libtpu: 0.0.40
codegen_flags: <defaults>
</compile_context>

<pallas_src>
import functools

import jax
import jax.numpy as jnp
from jax.experimental import pallas as pl
from jax.experimental.pallas import tpu as pltpu


def _round_up(x, m):
    return ((x + m - 1) // m) * m


def _cdiv(a, b):
    return -(-a // b)


def _sublane_multiple(dtype):
    return {4: 8, 2: 16, 1: 32}.get(jnp.dtype(dtype).itemsize, 8)


def _vmem_footprint_bytes(shape, dtype):
    """Approximate VMEM bytes for one buffer, including (sublane, lane) padding."""
    itemsize = jnp.dtype(dtype).itemsize
    dims = list(shape)
    dims[-1] = _round_up(dims[-1], 128)
    if len(dims) >= 2:
        dims[-2] = _round_up(dims[-2], _sublane_multiple(dtype))
    n = 1
    for d in dims:
        n *= d
    return n * itemsize


def _vmem_capacity_bytes():
    try:
        return int(pltpu.get_tpu_info().vmem_capacity_bytes)
    except Exception:
        return 64 * 1024 * 1024  # conservative (v7x per-core VMEM)


def _head_kernel(x_ref, wt_ref, b_ref, o_ref, acc_ref, *, inv_hw):
    # x_ref  : (tile_n, C, tile_hw)  -- HW lane-dense, C on sublanes (NCHW native)
    # wt_ref : (C, OUT)              -- resident across the grid (constant index_map)
    # b_ref  : (1, OUT) f32
    # o_ref  : (tile_n, OUT)         -- written only on the last HW step
    # acc_ref: (tile_n, C) f32 scratch carried across the HW ("arbitrary") axis
    hw_id = pl.program_id(1)

    @pl.when(hw_id == 0)
    def _():
        acc_ref[...] = jnp.zeros_like(acc_ref)

    # Partial spatial sum; the widening cast is fused into the reduction so no
    # f32 copy of the (tile_n, C, tile_hw) tile is materialized.
    acc_ref[...] += jnp.sum(x_ref[...], axis=-1, dtype=jnp.float32)

    @pl.when(hw_id == pl.num_programs(1) - 1)
    def _():
        pooled = acc_ref[...] * inv_hw                             # mean over H*W
        y = jnp.dot(pooled, wt_ref[...].astype(jnp.float32),
                    preferred_element_type=jnp.float32)            # (tile_n, OUT)
        o_ref[...] = (y + b_ref[...]).astype(o_ref.dtype)


def base_classification_head(x_nchw, weight, bias, *, vmem_budget_bytes=None):
    """x_nchw: (N, C, H, W); weight: (OUT, C) torch layout; bias: (OUT,)."""
    n, c, h, w = x_nchw.shape
    out_ch = weight.shape[0]
    hw = h * w
    x_dtype = x_nchw.dtype
    itemsize = jnp.dtype(x_dtype).itemsize

    # ---------------- batch tiling ----------------
    if n <= 16:
        # No zero-padding waste for inference-style small batches; the leading
        # block dim has no (8,128) constraint.
        tile_n = n
    else:
        # Guarantee >= 2 N tiles so both v7x TensorCores get independent work.
        tile_n = min(_round_up(_cdiv(n, 2), 8), 64)
    n_pad = _round_up(n, tile_n)

    # ---------------- VMEM budget / HW tiling ----------------
    vmem_cap = _vmem_capacity_bytes()
    if vmem_budget_bytes is None:
        vmem_budget_bytes = int(vmem_cap * 3 // 4)   # leave compiler headroom

    w_bytes = _vmem_footprint_bytes((c, out_ch), weight.dtype)
    b_bytes = _vmem_footprint_bytes((1, out_ch), jnp.float32)
    acc_bytes = _vmem_footprint_bytes((tile_n, c), jnp.float32)
    out_bytes = _vmem_footprint_bytes((tile_n, out_ch), x_dtype)
    fixed_bytes = 2 * (w_bytes + b_bytes + out_bytes) + acc_bytes

    per_x_buf = max((vmem_budget_bytes - fixed_bytes) // 2, 1 << 20)

    # Bytes for one 128-lane group of the x block, including sublane padding of C.
    lane_group_bytes = tile_n * _round_up(c, _sublane_multiple(x_dtype)) * 128 * itemsize
    max_hw_groups = max(per_x_buf // lane_group_bytes, 1)

    hw_groups = _cdiv(hw, 128)
    if hw_groups <= max_hw_groups:
        tile_hw, hw_pad = hw, hw                      # single HW step, no padding
    else:
        # Balanced tiling: near-equal 128-multiple tiles, minimal zero padding.
        n_hw_tiles = _cdiv(hw_groups, max_hw_groups)
        tile_hw = _cdiv(hw_groups, n_hw_tiles) * 128
        hw_pad = _round_up(hw, tile_hw)

    # (N, C, H, W) -> (N, C, H*W) is a free reshape (no data movement).
    x_ncl = x_nchw.reshape(n, c, hw)
    if (n_pad, hw_pad) != (n, hw):
        # Zero padding is neutral to the spatial sum (division uses true HW);
        # padded batch rows are sliced off below.
        x_ncl = jnp.pad(x_ncl, ((0, n_pad - n), (0, 0), (0, hw_pad - hw)))

    w_t = weight.T                                    # (C, OUT)
    b2d = bias.reshape(1, out_ch).astype(jnp.float32)

    grid = (n_pad // tile_n, hw_pad // tile_hw)

    x_block_bytes = _vmem_footprint_bytes((tile_n, c, tile_hw), x_dtype)
    vmem_limit = fixed_bytes + 2 * x_block_bytes + (2 << 20)
    vmem_limit = int(min(max(vmem_limit, 16 << 20), vmem_cap))

    kernel = functools.partial(_head_kernel, inv_hw=float(1.0 / hw))

    out = pl.pallas_call(
        kernel,
        out_shape=jax.ShapeDtypeStruct((n_pad, out_ch), x_dtype),
        grid_spec=pltpu.PrefetchScalarGridSpec(
            num_scalar_prefetch=0,
            grid=grid,
            in_specs=[
                # x: auto-pipelined (double-buffered) HBM -> VMEM tiles,
                # consumed in native NCHW order (C equals full dim, HW tiled).
                pl.BlockSpec((tile_n, c, tile_hw), lambda i, j: (i, 0, j)),
                # weight / bias: constant index_map -> DMA'd once, resident.
                pl.BlockSpec((c, out_ch), lambda i, j: (0, 0)),
                pl.BlockSpec((1, out_ch), lambda i, j: (0, 0)),
            ],
            out_specs=pl.BlockSpec((tile_n, out_ch), lambda i, j: (i, 0)),
            scratch_shapes=[pltpu.VMEM((tile_n, c), jnp.float32)],
        ),
        compiler_params=pltpu.CompilerParams(
            # N tiles parallel (v7x 2-TC megacore); HW reduction is arbitrary.
            dimension_semantics=("parallel", "arbitrary"),
            vmem_limit_bytes=vmem_limit,
        ),
    )(x_ncl, w_t, b2d)

    return out[:n]


if __name__ == "__main__":
    # Small, deterministic setup consistent with the module's forward.
    N, C, H, W = 2, 32, 16, 16       # in_channel = 32
    OUT = 8                          # out_channel = 8

    key = jax.random.PRNGKey(0)
    kx, kw, kb = jax.random.split(key, 3)
    x = jax.random.normal(kx, (N, C, H, W), dtype=jnp.float32)
    # Deterministic "nn.Linear" parameters (synthetic init, not a checkpoint).
    weight = jax.random.normal(kw, (OUT, C), dtype=jnp.float32) * 0.05
    bias = jax.random.normal(kb, (OUT,), dtype=jnp.float32) * 0.05

    y = base_classification_head(x, weight, bias)
    y = jax.block_until_ready(y)

    # Pure-JAX reference (adaptive avg pool -> flatten -> linear).
    ref = jnp.mean(x, axis=(2, 3)) @ weight.T + bias
    assert y.shape == (N, OUT)
    assert jnp.allclose(y, ref, atol=1e-5, rtol=1e-5), "mismatch vs reference"

    print("KERNEL_OK")
</pallas_src>

<mosaic_0001>
module attributes {stable_mosaic.version = 11 : i64} {
  func.func @_head_kernel(%arg0: i32, %arg1: i32, %arg2: memref<2x32x256xf32, #tpu.memory_space<vmem>>, %arg3: memref<32x8xf32, #tpu.memory_space<vmem>>, %arg4: memref<1x8xf32, #tpu.memory_space<vmem>>, %arg5: memref<2x8xf32, #tpu.memory_space<vmem>>, %arg6: memref<2x32xf32, #tpu.memory_space<vmem>>) attributes {dimension_semantics = [#tpu.dimension_semantics<parallel>, #tpu.dimension_semantics<arbitrary>], iteration_bounds = array<i64: 1, 1>, scalar_prefetch = 0 : i64, scratch_operands = 1 : i64, tpu.core_type = #tpu.core_type<tc>, window_params = [{transform_indices = @transform_0, window_bounds = array<i64: 2, 32, 256>}, {pipeline_mode = #tpu.pipeline_mode<synchronous>, transform_indices = @transform_1, window_bounds = array<i64: 32, 8>}, {pipeline_mode = #tpu.pipeline_mode<synchronous>, transform_indices = @transform_2, window_bounds = array<i64: 1, 8>}, {transform_indices = @transform_3, window_bounds = array<i64: 2, 8>}]} {
    %c0_i32 = arith.constant 0 : i32
    %0 = arith.cmpi eq, %arg1, %c0_i32 : i32
    %1 = arith.extui %0 : i1 to i32
    %c0_i32_0 = arith.constant 0 : i32
    %2 = arith.cmpi ne, %1, %c0_i32_0 : i32
    scf.if %2 {
      %cst_9 = arith.constant 0.000000e+00 : f32
      %11 = vector.broadcast %cst_9 : f32 to vector<2x32xf32>
      %c0_10 = arith.constant 0 : index
      %c0_11 = arith.constant 0 : index
      %12 = vector.load %arg6[%c0_10, %c0_11] : memref<2x32xf32, #tpu.memory_space<vmem>>, vector<2x32xf32>
      tpu.vector_store %arg6[%c0_10, %c0_11], %11 {strides = array<i32>} : memref<2x32xf32, #tpu.memory_space<vmem>>, vector<2x32xf32>,
    } else {
    }
    %c0 = arith.constant 0 : index
    %c0_1 = arith.constant 0 : index
    %3 = vector.load %arg6[%c0, %c0_1] : memref<2x32xf32, #tpu.memory_space<vmem>>, vector<2x32xf32>
    %c0_2 = arith.constant 0 : index
    %c0_3 = arith.constant 0 : index
    %c0_4 = arith.constant 0 : index
    %4 = vector.load %arg2[%c0_2, %c0_3, %c0_4] : memref<2x32x256xf32, #tpu.memory_space<vmem>>, vector<2x32x256xf32>
    %cst = arith.constant dense<0.000000e+00> : vector<2x32xf32>
    %5 = vector.multi_reduction <add>, %4, %cst [2] : vector<2x32x256xf32> to vector<2x32xf32>
    %6 = arith.addf %3, %5 : vector<2x32xf32>
    %c0_5 = arith.constant 0 : index
    %c0_6 = arith.constant 0 : index
    %7 = vector.load %arg6[%c0_5, %c0_6] : memref<2x32xf32, #tpu.memory_space<vmem>>, vector<2x32xf32>
    tpu.vector_store %arg6[%c0_5, %c0_6], %6 {strides = array<i32>} : memref<2x32xf32, #tpu.memory_space<vmem>>, vector<2x32xf32>,
    %c0_i32_7 = arith.constant 0 : i32
    %8 = arith.cmpi eq, %arg1, %c0_i32_7 : i32
    %9 = arith.extui %8 : i1 to i32
    %c0_i32_8 = arith.constant 0 : i32
    %10 = arith.cmpi ne, %9, %c0_i32_8 : i32
    scf.if %10 {
      %c0_9 = arith.constant 0 : index
      %c0_10 = arith.constant 0 : index
      %11 = vector.load %arg6[%c0_9, %c0_10] : memref<2x32xf32, #tpu.memory_space<vmem>>, vector<2x32xf32>
      %cst_11 = arith.constant 3.906250e-03 : f32
      %12 = vector.broadcast %cst_11 : f32 to vector<2x32xf32>
      %13 = arith.mulf %11, %12 : vector<2x32xf32>
      %c0_12 = arith.constant 0 : index
      %c0_13 = arith.constant 0 : index
      %14 = vector.load %arg3[%c0_12, %c0_13] : memref<32x8xf32, #tpu.memory_space<vmem>>, vector<32x8xf32>
      %cst_14 = arith.constant dense<0.000000e+00> : vector<2x8xf32>
      %15 = tpu.matmul %13, %14, %cst_14 {dimension_numbers = #tpu.dot_dimension_numbers<[1], [0], [0], [1], [0, 0, 1, 1], [], []>} : vector<2x32xf32>, vector<32x8xf32>, vector<2x8xf32> -> vector<2x8xf32>
      %c0_15 = arith.constant 0 : index
      %c0_16 = arith.constant 0 : index
      %16 = vector.load %arg4[%c0_15, %c0_16] : memref<1x8xf32, #tpu.memory_space<vmem>>, vector<1x8xf32>
      %17 = vector.broadcast %16 : vector<1x8xf32> to vector<2x8xf32>
      %18 = arith.addf %15, %17 : vector<2x8xf32>
      %c0_17 = arith.constant 0 : index
      %c0_18 = arith.constant 0 : index
      %19 = vector.load %arg5[%c0_17, %c0_18] : memref<2x8xf32, #tpu.memory_space<vmem>>, vector<2x8xf32>
      tpu.vector_store %arg5[%c0_17, %c0_18], %18 {strides = array<i32>} : memref<2x8xf32, #tpu.memory_space<vmem>>, vector<2x8xf32>,
    } else {
    }
    return
  }
  func.func @transform_0(%arg0: i32, %arg1: i32) -> (i32, i32, i32) {
    %c0_i32 = arith.constant 0 : i32
    %c0_i32_0 = arith.constant 0 : i32
    return %arg0, %c0_i32, %arg1 : i32, i32, i32
  }
  func.func @transform_1(%arg0: i32, %arg1: i32) -> (i32, i32) {
    %c0_i32 = arith.constant 0 : i32
    %c0_i32_0 = arith.constant 0 : i32
    %c0_i32_1 = arith.constant 0 : i32
    return %c0_i32, %c0_i32_0 : i32, i32
  }
  func.func @transform_2(%arg0: i32, %arg1: i32) -> (i32, i32) {
    %c0_i32 = arith.constant 0 : i32
    %c0_i32_0 = arith.constant 0 : i32
    %c0_i32_1 = arith.constant 0 : i32
    return %c0_i32, %c0_i32_0 : i32, i32
  }
  func.func @transform_3(%arg0: i32, %arg1: i32) -> (i32, i32) {
    %c0_i32 = arith.constant 0 : i32
    %c0_i32_0 = arith.constant 0 : i32
    return %arg0, %c0_i32 : i32, i32
  }
}

</mosaic_0001>

<llo_original>
// kernel: tpu_custom_call.1
$region0: #{tpu_custom_call.1}
  #allocation0 [shape = 'u32[]', space=smem, size = 0x4, offset = 0x4, fixed_abs, tag = 'smem constant byte address 0x4 - core index']
  #allocation1 [shape = 'u32[144,128]{1,0:T(1,128)}', space=vmem, size = 0x12000, scoped, tag = 'internal scratch']
  #allocation2 [shape = 'f32[2,32]{1,0:T(2,128)}', space=vmem, size = 0x400, scoped, tag = 'scratch operand']
  %s0 = inlined_call_operand.hbm [shape: f32[2,32,256], index: 0, kind: input, shape index: {}]
  %s1 = inlined_call_operand.vmem [shape: f32[32,8], index: 1, kind: input, shape index: {}]
  %s2 = inlined_call_operand.vmem [shape: f32[1,8], index: 2, kind: input, shape index: {}]
  %s3 = inlined_call_operand.hbm [shape: f32[2,8], index: 3, kind: output, shape index: {}]
  %s4 = sld [smem:[#allocation0]]
  $region34: #{tpu_custom_call.1} parent=0
    _
  %s6 = ssub.s32 1, %s4
  %s7 = scalar_select 0, %s6, %s4
  $region1: #{tpu_custom_call.1} parent=0
    #allocation3 [shape = 'u8[65536]{0}', space=vmem, size = 0x10000, scoped, tag = 'input window, operand 0, single buffered']
    #allocation4 [shape = 's32[1]{0}', space=sflag, size = 0x4, scoped, tag = 'scoped memory for tpu_custom_call.1']
    #allocation5 [shape = 's32[1]{0}', space=sflag, size = 0x4, scoped, tag = 'scoped memory for tpu_custom_call.1']
    #allocation6 [shape = 'u8[1024]{0}', space=vmem, size = 0x400, scoped, tag = 'output window, operand 0, single buffered']
    %8 = vsyncpa [#allocation4], 0
    %9 = vsyncpa [#allocation5], 0
    // Predicated region
    $region2: #{tpu_custom_call.1} parent=1 // pred_check
      _
    $region3: #{tpu_custom_call.1} parent=1 // pred_check_branch
      %11 = sbr.rel (0) target = $region5
    $region4: #{tpu_custom_call.1} parent=1 // pred_region
      %s13 = ssub.s32 2048, 2048
      %14 = vsyncadd [#allocation4], %s13
      %s15 = sshll.u32 [#allocation3], 4
      %s16 = int_to_ptr.vmem [resolvable:$true] %s15
      %21 = dma.hbm_to_vmem [thread:$0]  %s0, 2048, %s16, [#allocation4], 256, 256, 16
    $region5: #{tpu_custom_call.1} parent=1 // pred_fallthru
      _
    // Predicated region
    $region6: #{tpu_custom_call.1} parent=1 // pred_check
      _
    $region7: #{tpu_custom_call.1} parent=1 // pred_check_branch
      %23 = sbr.rel (0) target = $region9
    $region8: #{tpu_custom_call.1} parent=1 // pred_region
      _
    $region9: #{tpu_custom_call.1} parent=1 // pred_fallthru
      _
    // Predicated region
    $region10: #{tpu_custom_call.1} parent=1 // pred_check
      _
    $region11: #{tpu_custom_call.1} parent=1 // pred_check_branch
      %25 = sbr.rel (0) target = $region13
    $region12: #{tpu_custom_call.1} parent=1 // pred_region
      _
    $region13: #{tpu_custom_call.1} parent=1 // pred_fallthru
      _
    // Predicated region
    $region14: #{tpu_custom_call.1} parent=1 // pred_check
      _
    $region15: #{tpu_custom_call.1} parent=1 // pred_check_branch
      %27 = sbr.rel (0) target = $region17
    $region16: #{tpu_custom_call.1} parent=1 // pred_region
      %28 = dma.done [#allocation4], 2048
    $region17: #{tpu_custom_call.1} parent=1 // pred_fallthru
      _
    %p29 = scmp.eq.s32.totalorder 0, 0
    // Predicated region
    $region18: #{tpu_custom_call.1} parent=1 // pred_check
      %p30 = pneg %p29
    $region19: #{tpu_custom_call.1} parent=1 // pred_check_branch
      %32 = sbr.rel (%p30) target = $region21
    $region20: #{tpu_custom_call.1} parent=1 // pred_region
      %vm33 = vcmask 254976
      %34 = vst.msk [vmem:[#allocation2] sm:$0x3] %vm33, 0.0
    $region21: #{tpu_custom_call.1} parent=1 // pred_fallthru
      _
    %v35 = vld [vmem:[#allocation2] sm:$0x3]
    %v36 = vld [vmem:[#allocation3] sm:$0xff]
    %v37 = vld [vmem:[#allocation3 + $0x8] sm:$0xff]
    %v38 = vld [vmem:[#allocation3 + $0x10] sm:$0xff]
    %v39 = vld [vmem:[#allocation3 + $0x18] sm:$0xff]
    %v40 = vld [vmem:[#allocation3 + $0x20] sm:$0xff]
    %v41 = vld [vmem:[#allocation3 + $0x28] sm:$0xff]
    %v42 = vld [vmem:[#allocation3 + $0x30] sm:$0xff]
    %v43 = vld [vmem:[#allocation3 + $0x38] sm:$0xff]
    %v44 = vld [vmem:[#allocation3 + $0x40] sm:$0xff]
    %v45 = vld [vmem:[#allocation3 + $0x48] sm:$0xff]
    %v46 = vld [vmem:[#allocation3 + $0x50] sm:$0xff]
    %v47 = vld [vmem:[#allocation3 + $0x58] sm:$0xff]
    %v48 = vld [vmem:[#allocation3 + $0x60] sm:$0xff]
    %v49 = vld [vmem:[#allocation3 + $0x68] sm:$0xff]
    %v50 = vld [vmem:[#allocation3 + $0x70] sm:$0xff]
    %v51 = vld [vmem:[#allocation3 + $0x78] sm:$0xff]
    %v52 = vadd.f32 %v36, %v37
    %53 = vadd.xlane.f32.xlu0 %v52
    %v54 = vpop.xlane.xlu0 %53
    %v55 = vadd.f32 %v38, %v39
    %56 = vadd.xlane.f32.xlu0 %v55
    %v57 = vpop.xlane.xlu0 %56
    %v58 = vadd.f32 %v40, %v41
    %59 = vadd.xlane.f32.xlu0 %v58
    %v60 = vpop.xlane.xlu0 %59
    %v61 = vadd.f32 %v42, %v43
    %62 = vadd.xlane.f32.xlu0 %v61
    %v63 = vpop.xlane.xlu0 %62
    %v64 = vadd.f32 %v44, %v45
    %65 = vadd.xlane.f32.xlu0 %v64
    %v66 = vpop.xlane.xlu0 %65
    %v67 = vadd.f32 %v46, %v47
    %68 = vadd.xlane.f32.xlu0 %v67
    %v69 = vpop.xlane.xlu0 %68
    %v70 = vadd.f32 %v48, %v49
    %71 = vadd.xlane.f32.xlu0 %v70
    %v72 = vpop.xlane.xlu0 %71
    %v73 = vadd.f32 %v50, %v51
    %74 = vadd.xlane.f32.xlu0 %v73
    %v75 = vpop.xlane.xlu0 %74
    %v84 = vlaneseq
    %v85 = vand.u32 %v84, 127
    %v86 = vlaneseq
    %v87 = vshrl.u32 %v86, 7
    %v88 = vsub.s32 %v85, %v87
    %v89 = vrot.slane %v54, %v88
    %v90 = vadd.s32 %v85, 4294967288
    %v91 = vlaneseq
    %v92 = vshrl.u32 %v91, 7
    %v93 = vsub.s32 %v90, %v92
    %v94 = vrot.slane %v57, %v93
    %vm95 = vcmask 130112
    %v96 = vsel %vm95, %v94, %v89
    %v97 = vadd.s32 %v85, 4294967280
    %v98 = vlaneseq
    %v99 = vshrl.u32 %v98, 7
    %v100 = vsub.s32 %v97, %v99
    %v101 = vrot.slane %v60, %v100
    %vm102 = vcmask 195712
    %v103 = vsel %vm102, %v101, %v96
    %v104 = vadd.s32 %v85, 4294967272
    %v105 = vlaneseq
    %v106 = vshrl.u32 %v105, 7
    %v107 = vsub.s32 %v104, %v106
    %v108 = vrot.slane %v63, %v107
    %vm109 = vcmask 261312
    %v110 = vsel %vm109, %v108, %v103
    %v111 = vlaneseq
    %v112 = vshrl.u32 %v111, 7
    %v113 = vsub.s32 %v85, %v112
    %v114 = vrot.slane %v66, %v113
    %v115 = vlaneseq
    %v116 = vshrl.u32 %v115, 7
    %v117 = vsub.s32 %v90, %v116
    %v118 = vrot.slane %v69, %v117
    %v119 = vsel %vm95, %v118, %v114
    %v120 = vlaneseq
    %v121 = vshrl.u32 %v120, 7
    %v122 = vsub.s32 %v97, %v121
    %v123 = vrot.slane %v72, %v122
    %v124 = vsel %vm102, %v123, %v119
    %v125 = vlaneseq
    %v126 = vshrl.u32 %v125, 7
    %v127 = vsub.s32 %v104, %v126
    %v128 = vrot.slane %v75, %v127
    %v129 = vsel %vm109, %v128, %v124
    %vm130 = vcmask 1041409
    %v131 = vsel %vm130, %v129, %v110
    %v133 = vadd.f32 %v35, %v131
    %vm134 = vcmask 254976
    %135 = vst.msk [vmem:[#allocation2] sm:$0x3] %vm134, %v133
    // Predicated region
    $region22: #{tpu_custom_call.1} parent=1 // pred_check
      %p136 = pneg %p29
    $region23: #{tpu_custom_call.1} parent=1 // pred_check_branch
      %138 = sbr.rel (%p136) target = $region25
    $region24: #{tpu_custom_call.1} parent=1 // pred_region
      %v139 = vld [vmem:[#allocation2] sm:$0x3]
      %v140 = vmul.f32 %v139, 0.00390625
      %v141 = vld [vmem:[%s1] sm:$0xff]
      %v142 = vld [vmem:[%s1 + $0x8] sm:$0xff]
      %v143 = vld [vmem:[%s1 + $0x10] sm:$0xff]
      %v144 = vld [vmem:[%s1 + $0x18] sm:$0xff]
      %v145 = vld [vmem:[%s2] sm:$0x1]
      %v147 = vlaneseq
      %v148 = vshrl.u32 %v147, 7
      %v149 = vsub.s32 0, %v148
      %v150 = vrot.slane %v145, %v149
      %vm152 = vcmask 261120
      %v154 = vsel %vm152, %v140, 0
      %156 = vmatprep.subr.mxu0 0.0
      %157 = vmatpush1.msra.mxu0 %v141
      %158 = vmatprep.subr.mxu0 0.0
      %159 = vmatpush1.msra.mxu0 %v142
      %160 = vmatprep.subr.mxu0 0.0
      %161 = vmatpush1.msra.mxu0 %v143
      %162 = vmatprep.subr.mxu0 0.0
      %163 = vmatpush1.msra.mxu0 %v144
      %164 = vmatprep.subr.mxu0 0.0
      %165 = vmatpush1.msra.mxu0 0.0
      %166 = vmatprep.subr.mxu0 0.0
      %167 = vmatpush1.msra.mxu0 0.0
      %168 = vmatprep.subr.mxu0 0.0
      %169 = vmatpush1.msra.mxu0 0.0
      %170 = vmatprep.subr.mxu0 0.0
      %171 = vmatpush1.msra.mxu0 0.0
      %172 = vmatprep.subr.mxu0 0.0
      %173 = vmatpush1.msra.mxu0 0.0
      %174 = vmatprep.subr.mxu0 0.0
      %175 = vmatpush1.msra.mxu0 0.0
      %176 = vmatprep.subr.mxu0 0.0
      %177 = vmatpush1.msra.mxu0 0.0
      %178 = vmatprep.subr.mxu0 0.0
      %179 = vmatpush1.msra.mxu0 0.0
      %180 = vmatprep.subr.mxu0 0.0
      %181 = vmatpush1.msra.mxu0 0.0
      %182 = vmatprep.subr.mxu0 0.0
      %183 = vmatpush1.msra.mxu0 0.0
      %184 = vmatprep.subr.mxu0 0.0
      %185 = vmatpush1.msra.mxu0 0.0
      %186 = vmatprep.subr.mxu0 0.0
      %187 = vmatpush1.msra.mxu0 0.0
      %188 = vmatprep.subr.mxu0 0.0
      %189 = vmatpush1.msra.mxu0 0.0
      %190 = vmatprep.subr.mxu0 0.0
      %191 = vmatpush1.msra.mxu0 0.0
      %192 = vmatprep.subr.mxu0 0.0
      %193 = vmatpush1.msra.mxu0 0.0
      %194 = vmatprep.subr.mxu0 0.0
      %195 = vmatpush1.msra.mxu0 0.0
      %196 = vmatprep.subr.mxu0 0.0
      %197 = vmatpush1.msra.mxu0 0.0
      %198 = vmatprep.subr.mxu0 0.0
      %199 = vmatpush1.msra.mxu0 0.0
      %200 = vmatprep.subr.mxu0 0.0
      %201 = vmatpush1.msra.mxu0 0.0
      %202 = vmatprep.subr.mxu0 0.0
      %203 = vmatpush1.msra.mxu0 0.0
      %204 = vmatprep.subr.mxu0 0.0
      %205 = vmatpush1.msra.mxu0 0.0
      %206 = vmatprep.subr.mxu0 0.0
      %207 = vmatpush1.msra.mxu0 0.0
      %208 = vmatprep.subr.mxu0 0.0
      %209 = vmatpush1.msra.mxu0 0.0
      %210 = vmatprep.subr.mxu0 0.0
      %211 = vmatpush1.msra.mxu0 0.0
      %212 = vmatprep.subr.mxu0 0.0
      %213 = vmatpush1.msra.mxu0 0.0
      %214 = vmatprep.subr.mxu0 0.0
      %215 = vmatpush1.msra.mxu0 0.0
      %216 = vmatprep.subr.mxu0 0.0
      %217 = vmatpush1.msra.mxu0 0.0
      %218 = vmatprep.subr.mxu0 0.0
      %219 = vmatpush1.msra.mxu0 0.0
      %220 = vmatprep.mubr.f32.mxu0 0.0
      %221 = vmatmul.mubr.f32.gmra.mrb[0].mxu0 %v154
      %v222 = vpop.f32.mrb[0].mxu0
      %v223 = vadd.f32 %v150, %v222
      %v224 = vpop.f32.mrb[0].mxu0
      %225 = vdwg.mxu0
      %vm226 = vcmask 58368
      %227 = vst.msk [vmem:[#allocation6] sm:$0x3] %vm226, %v223
    $region25: #{tpu_custom_call.1} parent=1 // pred_fallthru
      _
    // Predicated region
    $region26: #{tpu_custom_call.1} parent=1 // pred_check
      _
    $region27: #{tpu_custom_call.1} parent=1 // pred_check_branch
      %229 = sbr.rel (0) target = $region29
    $region28: #{tpu_custom_call.1} parent=1 // pred_region
      %s231 = ssub.s32 32, 32
      %232 = vsyncadd [#allocation5], %s231
      %s234 = sshll.u32 [#allocation6], 4
      %s235 = int_to_ptr.vmem [resolvable:$true] %s234
      %237 = dma.vmem_to_hbm [thread:$0]  %s235, 32, %s3, [#allocation5]
    $region29: #{tpu_custom_call.1} parent=1 // pred_fallthru
      _
    // Predicated region
    $region30: #{tpu_custom_call.1} parent=1 // pred_check
      _
    $region31: #{tpu_custom_call.1} parent=1 // pred_check_branch
      %239 = sbr.rel (0) target = $region33
    $region32: #{tpu_custom_call.1} parent=1 // pred_region
      %240 = dma.done [#allocation5], 32
    $region33: #{tpu_custom_call.1} parent=1 // pred_fallthru
      _
    %241 = vsyncpa [#allocation4], 1
    %242 = vsyncpa [#allocation5], 1

</llo_original>
